<compile_context>
chip_gen: v7x
topology: tpu7x:2x2x1
jax: 0.10.0
libtpu: 0.0.40
codegen_flags: <defaults>
</compile_context>

<pallas_src>
import functools

import jax
import jax.numpy as jnp
from jax.experimental import pallas as pl


def _identity_kernel(x_hbm_ref, o_hbm_ref):
    # The output aliases the input HBM buffer (input_output_aliases={0: 0}),
    # so every byte is already exactly where it needs to be: nothing to do.
    # (If this template is reused for a non-identity op, the body must
    # actually write o_hbm_ref, e.g. via pltpu.make_async_copy.)
    del x_hbm_ref, o_hbm_ref


def _identity_pallas(x: jax.Array) -> jax.Array:
    return pl.pallas_call(
        _identity_kernel,
        out_shape=jax.ShapeDtypeStruct(x.shape, x.dtype),
        # Keep both operands in HBM; no auto-DMA, no blocking constraints.
        in_specs=[pl.BlockSpec(memory_space=pl.ANY)],
        out_specs=pl.BlockSpec(memory_space=pl.ANY),
        # Output buffer *is* the input buffer -> zero HBM read/write traffic.
        input_output_aliases={0: 0},
        cost_estimate=pl.CostEstimate(flops=0, transcendentals=0, bytes_accessed=0),
    )(x)


@functools.partial(jax.jit, donate_argnums=(0,))
def identity(x: jax.Array) -> jax.Array:
    """Pallas identity: y == x, output aliased onto the (donated) input buffer."""
    if x.size == 0:  # static at trace time
        return x
    return _identity_pallas(x)


if __name__ == "__main__":
    key = jax.random.PRNGKey(0)
    shape = (2, 4, 16, 16)  # NCHW: batch=2, channels=4, spatial=16x16
    x = jax.random.normal(key, shape, dtype=jnp.float32)
    # `x` is donated into identity(); rebuild an identical reference buffer
    # from the same key so we can still compare afterwards.
    expected = jax.random.normal(key, shape, dtype=jnp.float32)

    y = identity(x)
    jax.block_until_ready(y)

    assert y.shape == expected.shape, (y.shape, expected.shape)
    assert y.dtype == expected.dtype, (y.dtype, expected.dtype)
    assert bool(jnp.array_equal(y, expected)), "identity output mismatch"

    print("KERNEL_OK")
</pallas_src>

<mosaic_0001>
module attributes {stable_mosaic.version = 11 : i64} {
  func.func @_identity_kernel(%arg0: memref<2x4x16x16xf32, #tpu.memory_space<any>>, %arg1: memref<2x4x16x16xf32, #tpu.memory_space<any>>) attributes {dimension_semantics = [], scalar_prefetch = 0 : i64, scratch_operands = 0 : i64, tpu.core_type = #tpu.core_type<tc>} {
    return
  }
}

</mosaic_0001>

<llo_original>
// kernel: identity.1
$region0: #{identity.1}
  #allocation0 [shape = 'u32[]', space=smem, size = 0x4, offset = 0x4, fixed_abs, tag = 'smem constant byte address 0x4 - core index']
  #allocation1 [shape = 'u32[144,128]{1,0:T(1,128)}', space=vmem, size = 0x12000, scoped, tag = 'internal scratch']
  %s0 = inlined_call_operand.hbm [shape: f32[2,4,16,16], index: 0, kind: input, shape index: {}, may-alias: {0,1}]
  %s1 = inlined_call_operand.hbm [shape: f32[2,4,16,16], index: 1, kind: output, shape index: {}, may-alias: {0,1}]
  %s2 = sld [smem:[#allocation0]]
  $region2: #{identity.1} parent=0
    _
  %s4 = ssub.s32 1, %s2
  %s5 = scalar_select 0, %s4, %s2

</llo_original>
